<compile_context>
chip_gen: v6e
topology: v6e:2x2x1
jax: 0.10.0
libtpu: 0.0.40
codegen_flags: <defaults>
</compile_context>

<pallas_src>
import math

import jax
import jax.numpy as jnp
from jax.experimental import pallas as pl
from jax.experimental.pallas import tpu as pltpu


def _round_up(x, m):
    return ((x + m - 1) // m) * m


def _critic_kernel(s_ref, a_ref,
                   w1s_ref, w1a_ref, b1_ref,
                   w2_ref, b2_ref,
                   w3_ref, b3_ref,
                   q_ref):
    # Batch-on-lanes layout: activations are (features, tb); all loads/stores
    # are lane-dense.  MXU operands stay in the packed compute dtype (bf16 in
    # the production path), accumulation and bias/ReLU are f32.
    h = (jnp.dot(w1s_ref[...], s_ref[...], preferred_element_type=jnp.float32)
         + jnp.dot(w1a_ref[...], a_ref[...], preferred_element_type=jnp.float32)
         + b1_ref[...])
    h = jnp.maximum(h, 0.0).astype(w2_ref.dtype)
    # Layer 2: block-diagonal (2H, 2H) keeps the two towers independent.
    h = jnp.dot(w2_ref[...], h, preferred_element_type=jnp.float32) + b2_ref[...]
    h = jnp.maximum(h, 0.0).astype(w3_ref.dtype)
    # Layer 3: (2, 2H) @ (2H, tb) -> lane-dense (2, tb); row 0 = q1, row 1 = q2.
    q_ref[...] = jnp.dot(w3_ref[...], h, preferred_element_type=jnp.float32) + b3_ref[...]


def pack_critic_params(params, state_dim, compute_dtype=jnp.bfloat16):
    """One-time packing of the twin-Q weights (keep this out of the hot path).

    Returns transposed, fused slabs for the batch-on-lanes kernel layout:
      w1s (2H,S), w1a (2H,A), b1 (2H,1), w2 (2H,2H block-diag), b2 (2H,1),
      w3 (2,2H), b3 (2,1).
    Matmul operands are cast to `compute_dtype` (bf16 default: native MXU rate
    on v5e/v6e/v7x); biases stay f32 and accumulation is always f32.
    """
    H = params["w11"].shape[1]
    S = state_dim

    w1 = jnp.concatenate([params["w11"], params["w21"]], axis=1)          # (S+A, 2H)
    w1s = w1[:S].T.astype(compute_dtype)                                  # (2H, S)
    w1a = w1[S:].T.astype(compute_dtype)                                  # (2H, A)
    b1 = jnp.concatenate([params["b11"], params["b21"]], axis=1).T        # (2H, 1)

    zHH = jnp.zeros((H, H), jnp.float32)
    w2 = jnp.block([[params["w12"], zHH],
                    [zHH, params["w22"]]]).T.astype(compute_dtype)        # (2H, 2H)
    b2 = jnp.concatenate([params["b12"], params["b22"]], axis=1).T        # (2H, 1)

    zH1 = jnp.zeros((H, 1), jnp.float32)
    w3 = jnp.concatenate(
        [jnp.concatenate([params["w13"], zH1], axis=0),
         jnp.concatenate([zH1, params["w23"]], axis=0)], axis=1)          # (2H, 2)
    w3 = w3.T.astype(compute_dtype)                                       # (2, 2H)
    b3 = jnp.concatenate([params["b13"], params["b23"]], axis=1).T        # (2, 1)

    return dict(w1s=w1s, w1a=w1a, b1=b1.astype(jnp.float32),
                w2=w2, b2=b2.astype(jnp.float32),
                w3=w3, b3=b3.astype(jnp.float32))


def critic_forward(state, action, packed, *, block_b=4096, return_packed=False):
    """state: (B, S), action: (B, A) -> (q1, q2), each (B, 1) float32.

    `packed` comes from pack_critic_params().  With return_packed=True the raw
    (2, B) slab is returned (row 0 = q1, row 1 = q2), skipping the post-kernel
    slices (preferred inside a hot RL loop).
    """
    B = state.shape[0]
    H2, S = packed["w1s"].shape
    A = packed["w1a"].shape[1]
    cdt = packed["w1s"].dtype

    # Batch-on-lanes: transpose + cast once in the wrapper (fuses into a single
    # XLA pass) so the kernel sees lane-dense (features, batch) tiles.
    state_t = state.T.astype(cdt)    # (S, B)
    action_t = action.T.astype(cdt)  # (A, B)

    # Batch tile on the lane axis: multiple of 128; at least 2 grid steps when
    # the batch allows it (so v7x's two TensorCores both get work); capped at
    # block_b (big tiles amortize the ~0.35 us per-grid-step overhead; the
    # lane-dense VMEM footprint is only ~128*tb bytes, safe on all generations).
    block_b = _round_up(max(block_b, 128), 128)
    tb = min(block_b, max(128, _round_up(pl.cdiv(B, 2), 128)))
    grid = (pl.cdiv(B, tb),)

    row_map = lambda i: (0, i)   # tiled over batch (lane axis)
    rep_map = lambda i: (0, 0)   # grid-invariant -> stays VMEM-resident

    # If an xprof trace ever shows exposed input DMA at very large B, add
    # pipeline_mode=pl.Buffered(3) to the state/action specs only.
    in_specs = [
        pl.BlockSpec((S, tb), row_map),
        pl.BlockSpec((A, tb), row_map),
        pl.BlockSpec((H2, S), rep_map),
        pl.BlockSpec((H2, A), rep_map),
        pl.BlockSpec((H2, 1), rep_map),
        pl.BlockSpec((H2, H2), rep_map),
        pl.BlockSpec((H2, 1), rep_map),
        pl.BlockSpec((2, H2), rep_map),
        pl.BlockSpec((2, 1), rep_map),
    ]
    out_spec = pl.BlockSpec((2, tb), row_map)

    w_item = jnp.dtype(cdt).itemsize
    flops = 2 * B * ((S + A) * H2 + H2 * H2 + H2 * 2)
    bytes_accessed = (B * (S + A) * w_item + B * 2 * 4
                      + ((S + A) * H2 + H2 * H2 + 2 * H2) * w_item
                      + (2 * H2 + 2) * 4)

    q_t = pl.pallas_call(
        _critic_kernel,
        out_shape=jax.ShapeDtypeStruct((2, B), jnp.float32),
        grid=grid,
        in_specs=in_specs,
        out_specs=out_spec,
        compiler_params=pltpu.CompilerParams(dimension_semantics=("parallel",)),
        cost_estimate=pl.CostEstimate(flops=flops, transcendentals=0,
                                      bytes_accessed=bytes_accessed),
    )(state_t, action_t,
      packed["w1s"], packed["w1a"], packed["b1"],
      packed["w2"], packed["b2"],
      packed["w3"], packed["b3"])

    if return_packed:
        return q_t                    # (2, B): row 0 = q1, row 1 = q2
    # Module-compatible (B, 1) outputs (tiny extra copy; hot loops should use
    # return_packed=True and slice lazily at the consumer).
    return q_t[0:1, :].T, q_t[1:2, :].T


def init_critic_params(state_dim, hidden_dim, action_dim, key):
    """Deterministic init mimicking nn.Linear's U(-1/sqrt(fan_in), 1/sqrt(fan_in))."""
    in_dim = state_dim + action_dim

    def linear(key, fan_in, fan_out):
        kw, kb = jax.random.split(key)
        bound = 1.0 / math.sqrt(fan_in)
        w = jax.random.uniform(kw, (fan_in, fan_out), jnp.float32, -bound, bound)
        b = jax.random.uniform(kb, (1, fan_out), jnp.float32, -bound, bound)
        return w, b

    keys = jax.random.split(key, 6)
    w11, b11 = linear(keys[0], in_dim, hidden_dim)
    w12, b12 = linear(keys[1], hidden_dim, hidden_dim)
    w13, b13 = linear(keys[2], hidden_dim, 1)
    w21, b21 = linear(keys[3], in_dim, hidden_dim)
    w22, b22 = linear(keys[4], hidden_dim, hidden_dim)
    w23, b23 = linear(keys[5], hidden_dim, 1)
    return dict(w11=w11, b11=b11, w12=w12, b12=b12, w13=w13, b13=b13,
                w21=w21, b21=b21, w22=w22, b22=b22, w23=w23, b23=b23)


def critic_reference(state, action, params):
    """Pure-JAX reference for correctness checking (mirrors the PyTorch module)."""
    x = jnp.concatenate([state, action], axis=1).astype(jnp.float32)

    def mlp(w1, b1, w2, b2, w3, b3):
        h = jnp.maximum(x @ w1 + b1, 0.0)
        h = jnp.maximum(h @ w2 + b2, 0.0)
        return h @ w3 + b3

    q1 = mlp(params["w11"], params["b11"], params["w12"], params["b12"],
             params["w13"], params["b13"])
    q2 = mlp(params["w21"], params["b21"], params["w22"], params["b22"],
             params["w23"], params["b23"])
    return q1, q2


if __name__ == "__main__":
    batch = 2
    state_dim = 8
    action_dim = 4
    hidden_dim = 32

    key = jax.random.PRNGKey(0)
    k_state, k_action, k_params = jax.random.split(key, 3)

    state = jax.random.normal(k_state, (batch, state_dim), jnp.float32)
    action = jax.random.normal(k_action, (batch, action_dim), jnp.float32)
    params = init_critic_params(state_dim, hidden_dim, action_dim, k_params)

    # --- f32 MXU operands: tight-tolerance check against the reference. ---
    packed_f32 = pack_critic_params(params, state_dim, compute_dtype=jnp.float32)
    fwd_f32 = jax.jit(lambda s, a: critic_forward(s, a, packed_f32))
    q1, q2 = fwd_f32(state, action)
    jax.block_until_ready((q1, q2))
    q1_ref, q2_ref = critic_reference(state, action, params)
    assert q1.shape == (batch, 1) and q2.shape == (batch, 1)
    assert jnp.allclose(q1, q1_ref, atol=1e-4, rtol=1e-4)
    assert jnp.allclose(q2, q2_ref, atol=1e-4, rtol=1e-4)

    # --- bf16 MXU operands (production path), tiled batch with a partial tile
    #     and >=2 grid steps (exercises the parallel grid / dual-TC path). ---
    packed_bf16 = pack_critic_params(params, state_dim)     # bf16 by default
    fwd_bf16 = jax.jit(lambda s, a: critic_forward(s, a, packed_bf16, block_b=4096))
    big_b = 4096 + 96
    ks, ka = jax.random.split(jax.random.PRNGKey(1))
    big_state = jax.random.normal(ks, (big_b, state_dim), jnp.float32)
    big_action = jax.random.normal(ka, (big_b, action_dim), jnp.float32)
    bq1, bq2 = fwd_bf16(big_state, big_action)
    jax.block_until_ready((bq1, bq2))
    bq1_ref, bq2_ref = critic_reference(big_state, big_action, params)
    # bf16 operands / f32 accumulation -> relaxed tolerance.
    assert jnp.allclose(bq1, bq1_ref, atol=5e-2, rtol=5e-2)
    assert jnp.allclose(bq2, bq2_ref, atol=5e-2, rtol=5e-2)

    print("KERNEL_OK")
</pallas_src>

<mosaic_0001>
module attributes {stable_mosaic.version = 11 : i64} {
  func.func @_critic_kernel(%arg0: i32, %arg1: memref<8x128xf32, #tpu.memory_space<vmem>>, %arg2: memref<4x128xf32, #tpu.memory_space<vmem>>, %arg3: memref<64x8xf32, #tpu.memory_space<vmem>>, %arg4: memref<64x4xf32, #tpu.memory_space<vmem>>, %arg5: memref<64x1xf32, #tpu.memory_space<vmem>>, %arg6: memref<64x64xf32, #tpu.memory_space<vmem>>, %arg7: memref<64x1xf32, #tpu.memory_space<vmem>>, %arg8: memref<2x64xf32, #tpu.memory_space<vmem>>, %arg9: memref<2x1xf32, #tpu.memory_space<vmem>>, %arg10: memref<2x128xf32, #tpu.memory_space<vmem>>) attributes {dimension_semantics = [#tpu.dimension_semantics<parallel>], iteration_bounds = array<i64: 1>, scalar_prefetch = 0 : i64, scratch_operands = 0 : i64, tpu.core_type = #tpu.core_type<tc>, window_params = [{transform_indices = @transform_0, window_bounds = array<i64: 8, 128>}, {transform_indices = @transform_1, window_bounds = array<i64: 4, 128>}, {pipeline_mode = #tpu.pipeline_mode<synchronous>, transform_indices = @transform_2, window_bounds = array<i64: 64, 8>}, {pipeline_mode = #tpu.pipeline_mode<synchronous>, transform_indices = @transform_3, window_bounds = array<i64: 64, 4>}, {pipeline_mode = #tpu.pipeline_mode<synchronous>, transform_indices = @transform_4, window_bounds = array<i64: 64, 1>}, {pipeline_mode = #tpu.pipeline_mode<synchronous>, transform_indices = @transform_5, window_bounds = array<i64: 64, 64>}, {pipeline_mode = #tpu.pipeline_mode<synchronous>, transform_indices = @transform_6, window_bounds = array<i64: 64, 1>}, {pipeline_mode = #tpu.pipeline_mode<synchronous>, transform_indices = @transform_7, window_bounds = array<i64: 2, 64>}, {pipeline_mode = #tpu.pipeline_mode<synchronous>, transform_indices = @transform_8, window_bounds = array<i64: 2, 1>}, {transform_indices = @transform_9, window_bounds = array<i64: 2, 128>}]} {
    %c0 = arith.constant 0 : index
    %c0_0 = arith.constant 0 : index
    %0 = vector.load %arg3[%c0, %c0_0] : memref<64x8xf32, #tpu.memory_space<vmem>>, vector<64x8xf32>
    %c0_1 = arith.constant 0 : index
    %c0_2 = arith.constant 0 : index
    %1 = vector.load %arg1[%c0_1, %c0_2] : memref<8x128xf32, #tpu.memory_space<vmem>>, vector<8x128xf32>
    %cst = arith.constant dense<0.000000e+00> : vector<64x128xf32>
    %2 = tpu.matmul %0, %1, %cst {dimension_numbers = #tpu.dot_dimension_numbers<[1], [0], [0], [1], [0, 0, 1, 1], [], []>} : vector<64x8xf32>, vector<8x128xf32>, vector<64x128xf32> -> vector<64x128xf32>
    %c0_3 = arith.constant 0 : index
    %c0_4 = arith.constant 0 : index
    %3 = vector.load %arg4[%c0_3, %c0_4] : memref<64x4xf32, #tpu.memory_space<vmem>>, vector<64x4xf32>
    %c0_5 = arith.constant 0 : index
    %c0_6 = arith.constant 0 : index
    %4 = vector.load %arg2[%c0_5, %c0_6] : memref<4x128xf32, #tpu.memory_space<vmem>>, vector<4x128xf32>
    %cst_7 = arith.constant dense<0.000000e+00> : vector<64x128xf32>
    %5 = tpu.matmul %3, %4, %cst_7 {dimension_numbers = #tpu.dot_dimension_numbers<[1], [0], [0], [1], [0, 0, 1, 1], [], []>} : vector<64x4xf32>, vector<4x128xf32>, vector<64x128xf32> -> vector<64x128xf32>
    %6 = arith.addf %2, %5 : vector<64x128xf32>
    %c0_8 = arith.constant 0 : index
    %c0_9 = arith.constant 0 : index
    %7 = vector.load %arg5[%c0_8, %c0_9] : memref<64x1xf32, #tpu.memory_space<vmem>>, vector<64x1xf32>
    %8 = vector.broadcast %7 : vector<64x1xf32> to vector<64x128xf32>
    %9 = arith.addf %6, %8 : vector<64x128xf32>
    %cst_10 = arith.constant 0.000000e+00 : f32
    %10 = vector.broadcast %cst_10 : f32 to vector<64x128xf32>
    %11 = arith.maximumf %9, %10 : vector<64x128xf32>
    %c0_11 = arith.constant 0 : index
    %c0_12 = arith.constant 0 : index
    %12 = vector.load %arg6[%c0_11, %c0_12] : memref<64x64xf32, #tpu.memory_space<vmem>>, vector<64x64xf32>
    %cst_13 = arith.constant dense<0.000000e+00> : vector<64x128xf32>
    %13 = tpu.matmul %12, %11, %cst_13 {dimension_numbers = #tpu.dot_dimension_numbers<[1], [0], [0], [1], [0, 0, 1, 1], [], []>} : vector<64x64xf32>, vector<64x128xf32>, vector<64x128xf32> -> vector<64x128xf32>
    %c0_14 = arith.constant 0 : index
    %c0_15 = arith.constant 0 : index
    %14 = vector.load %arg7[%c0_14, %c0_15] : memref<64x1xf32, #tpu.memory_space<vmem>>, vector<64x1xf32>
    %15 = vector.broadcast %14 : vector<64x1xf32> to vector<64x128xf32>
    %16 = arith.addf %13, %15 : vector<64x128xf32>
    %cst_16 = arith.constant 0.000000e+00 : f32
    %17 = vector.broadcast %cst_16 : f32 to vector<64x128xf32>
    %18 = arith.maximumf %16, %17 : vector<64x128xf32>
    %c0_17 = arith.constant 0 : index
    %c0_18 = arith.constant 0 : index
    %19 = vector.load %arg8[%c0_17, %c0_18] : memref<2x64xf32, #tpu.memory_space<vmem>>, vector<2x64xf32>
    %cst_19 = arith.constant dense<0.000000e+00> : vector<2x128xf32>
    %20 = tpu.matmul %19, %18, %cst_19 {dimension_numbers = #tpu.dot_dimension_numbers<[1], [0], [0], [1], [0, 0, 1, 1], [], []>} : vector<2x64xf32>, vector<64x128xf32>, vector<2x128xf32> -> vector<2x128xf32>
    %c0_20 = arith.constant 0 : index
    %c0_21 = arith.constant 0 : index
    %21 = vector.load %arg9[%c0_20, %c0_21] : memref<2x1xf32, #tpu.memory_space<vmem>>, vector<2x1xf32>
    %22 = vector.broadcast %21 : vector<2x1xf32> to vector<2x128xf32>
    %23 = arith.addf %20, %22 : vector<2x128xf32>
    %c0_22 = arith.constant 0 : index
    %c0_23 = arith.constant 0 : index
    %24 = vector.load %arg10[%c0_22, %c0_23] : memref<2x128xf32, #tpu.memory_space<vmem>>, vector<2x128xf32>
    tpu.vector_store %arg10[%c0_22, %c0_23], %23 {strides = array<i32>} : memref<2x128xf32, #tpu.memory_space<vmem>>, vector<2x128xf32>,
    return
  }
  func.func @transform_0(%arg0: i32) -> (i32, i32) {
    %c0_i32 = arith.constant 0 : i32
    %c0_i32_0 = arith.constant 0 : i32
    return %c0_i32, %arg0 : i32, i32
  }
  func.func @transform_1(%arg0: i32) -> (i32, i32) {
    %c0_i32 = arith.constant 0 : i32
    %c0_i32_0 = arith.constant 0 : i32
    return %c0_i32, %arg0 : i32, i32
  }
  func.func @transform_2(%arg0: i32) -> (i32, i32) {
    %c0_i32 = arith.constant 0 : i32
    %c0_i32_0 = arith.constant 0 : i32
    %c0_i32_1 = arith.constant 0 : i32
    return %c0_i32, %c0_i32_0 : i32, i32
  }
  func.func @transform_3(%arg0: i32) -> (i32, i32) {
    %c0_i32 = arith.constant 0 : i32
    %c0_i32_0 = arith.constant 0 : i32
    %c0_i32_1 = arith.constant 0 : i32
    return %c0_i32, %c0_i32_0 : i32, i32
  }
  func.func @transform_4(%arg0: i32) -> (i32, i32) {
    %c0_i32 = arith.constant 0 : i32
    %c0_i32_0 = arith.constant 0 : i32
    %c0_i32_1 = arith.constant 0 : i32
    return %c0_i32, %c0_i32_0 : i32, i32
  }
  func.func @transform_5(%arg0: i32) -> (i32, i32) {
    %c0_i32 = arith.constant 0 : i32
    %c0_i32_0 = arith.constant 0 : i32
    %c0_i32_1 = arith.constant 0 : i32
    return %c0_i32, %c0_i32_0 : i32, i32
  }
  func.func @transform_6(%arg0: i32) -> (i32, i32) {
    %c0_i32 = arith.constant 0 : i32
    %c0_i32_0 = arith.constant 0 : i32
    %c0_i32_1 = arith.constant 0 : i32
    return %c0_i32, %c0_i32_0 : i32, i32
  }
  func.func @transform_7(%arg0: i32) -> (i32, i32) {
    %c0_i32 = arith.constant 0 : i32
    %c0_i32_0 = arith.constant 0 : i32
    %c0_i32_1 = arith.constant 0 : i32
    return %c0_i32, %c0_i32_0 : i32, i32
  }
  func.func @transform_8(%arg0: i32) -> (i32, i32) {
    %c0_i32 = arith.constant 0 : i32
    %c0_i32_0 = arith.constant 0 : i32
    %c0_i32_1 = arith.constant 0 : i32
    return %c0_i32, %c0_i32_0 : i32, i32
  }
  func.func @transform_9(%arg0: i32) -> (i32, i32) {
    %c0_i32 = arith.constant 0 : i32
    %c0_i32_0 = arith.constant 0 : i32
    return %c0_i32, %arg0 : i32, i32
  }
}

</mosaic_0001>

<llo_original>
// kernel: _lambda_.1
$region0: #{_lambda_.1}
  #allocation0 [shape = 'u32[]', space=smem, size = 0x4, offset = 0x4, fixed_abs, tag = 'smem constant byte address 0x4 - core index']
  #allocation1 [shape = 'u32[144,128]{1,0:T(1,128)}', space=vmem, size = 0x12000, scoped, tag = 'internal scratch']
  %s0 = inlined_call_operand.vmem [shape: f32[8,2], index: 0, kind: input, shape index: {}]
  %s1 = inlined_call_operand.vmem [shape: f32[4,2], index: 1, kind: input, shape index: {}]
  %s2 = inlined_call_operand.hbm [shape: f32[64,8], index: 2, kind: input, shape index: {}]
  %s3 = inlined_call_operand.hbm [shape: f32[64,4], index: 3, kind: input, shape index: {}]
  %s4 = inlined_call_operand.hbm [shape: f32[64,1], index: 4, kind: input, shape index: {}]
  %s5 = inlined_call_operand.hbm [shape: f32[64,64], index: 5, kind: input, shape index: {}]
  %s6 = inlined_call_operand.hbm [shape: f32[64,1], index: 6, kind: input, shape index: {}]
  %s7 = inlined_call_operand.vmem [shape: f32[2,64], index: 7, kind: input, shape index: {}]
  %s8 = inlined_call_operand.vmem [shape: f32[2,1], index: 8, kind: input, shape index: {}]
  %s9 = inlined_call_operand.vmem [shape: f32[2,2], index: 9, kind: output, shape index: {}]
  %s10 = sld [smem:[#allocation0]]
  $region66: #{_lambda_.1} parent=0
    _
  %s12 = ssub.s32 1, %s10
  %s13 = scalar_select 0, %s12, %s10
  $region1: #{_lambda_.1} parent=0
    #allocation2 [shape = 'u8[32768]{0}', space=vmem, size = 0x8000, scoped, tag = 'input window, operand 2, single buffered']
    #allocation3 [shape = 's32[1]{0}', space=sflag, size = 0x4, scoped, tag = 'scoped memory for _lambda_.1']
    #allocation4 [shape = 'u8[32768]{0}', space=vmem, size = 0x8000, scoped, tag = 'input window, operand 3, single buffered']
    #allocation5 [shape = 's32[1]{0}', space=sflag, size = 0x4, scoped, tag = 'scoped memory for _lambda_.1']
    #allocation6 [shape = 'u8[32768]{0}', space=vmem, size = 0x8000, scoped, tag = 'input window, operand 4, single buffered']
    #allocation7 [shape = 'u8[32768]{0}', space=vmem, size = 0x8000, scoped, tag = 'input window, operand 5, single buffered']
    #allocation8 [shape = 's32[1]{0}', space=sflag, size = 0x4, scoped, tag = 'scoped memory for _lambda_.1']
    #allocation9 [shape = 'u8[32768]{0}', space=vmem, size = 0x8000, scoped, tag = 'input window, operand 6, single buffered']
    %14 = vsyncpa [#allocation3], 0
    %15 = vsyncpa [#allocation5], 0
    %16 = vsyncpa [#allocation8], 0
    // Predicated region
    $region2: #{_lambda_.1} parent=1 // pred_check
      _
    $region3: #{_lambda_.1} parent=1 // pred_check_branch
      %18 = sbr.rel (0) target = $region5
    $region4: #{_lambda_.1} parent=1 // pred_region
      _
    $region5: #{_lambda_.1} parent=1 // pred_fallthru
      _
    // Predicated region
    $region6: #{_lambda_.1} parent=1 // pred_check
      _
    $region7: #{_lambda_.1} parent=1 // pred_check_branch
      %20 = sbr.rel (0) target = $region9
    $region8: #{_lambda_.1} parent=1 // pred_region
      _
    $region9: #{_lambda_.1} parent=1 // pred_fallthru
      _
    // Predicated region
    $region10: #{_lambda_.1} parent=1 // pred_check
      _
    $region11: #{_lambda_.1} parent=1 // pred_check_branch
      %22 = sbr.rel (0) target = $region13
    $region12: #{_lambda_.1} parent=1 // pred_region
      %s24 = ssub.s32 1024, 1024
      %25 = vsyncadd [#allocation3], %s24
      %s26 = sshll.u32 [#allocation2], 4
      %s27 = int_to_ptr.vmem [resolvable:$true] %s26
      %32 = dma.hbm_to_vmem [thread:$0]  %s2, 1024, %s27, [#allocation3], 128, 128, 8
    $region13: #{_lambda_.1} parent=1 // pred_fallthru
      _
    // Predicated region
    $region14: #{_lambda_.1} parent=1 // pred_check
      _
    $region15: #{_lambda_.1} parent=1 // pred_check_branch
      %34 = sbr.rel (0) target = $region17
    $region16: #{_lambda_.1} parent=1 // pred_region
      %s36 = ssub.s32 1024, 1024
      %37 = vsyncadd [#allocation5], %s36
      %s38 = sshll.u32 [#allocation4], 4
      %s39 = int_to_ptr.vmem [resolvable:$true] %s38
      %44 = dma.hbm_to_vmem [thread:$0]  %s3, 1024, %s39, [#allocation5], 128, 128, 8
    $region17: #{_lambda_.1} parent=1 // pred_fallthru
      _
    // Predicated region
    $region18: #{_lambda_.1} parent=1 // pred_check
      _
    $region19: #{_lambda_.1} parent=1 // pred_check_branch
      %46 = sbr.rel (0) target = $region21
    $region20: #{_lambda_.1} parent=1 // pred_region
      %s48 = ssub.s32 1024, 1024
      %49 = vsyncadd [#allocation5], %s48
      %s50 = sshll.u32 [#allocation6], 4
      %s51 = int_to_ptr.vmem [resolvable:$true] %s50
      %56 = dma.hbm_to_vmem [thread:$0]  %s4, 1024, %s51, [#allocation5], 128, 128, 8
    $region21: #{_lambda_.1} parent=1 // pred_fallthru
      _
    // Predicated region
    $region22: #{_lambda_.1} parent=1 // pred_check
      _
    $region23: #{_lambda_.1} parent=1 // pred_check_branch
      %58 = sbr.rel (0) target = $region25
    $region24: #{_lambda_.1} parent=1 // pred_region
      %s60 = ssub.s32 1024, 1024
      %61 = vsyncadd [#allocation8], %s60
      %s62 = sshll.u32 [#allocation7], 4
      %s63 = int_to_ptr.vmem [resolvable:$true] %s62
      %68 = dma.hbm_to_vmem [thread:$0]  %s5, 1024, %s63, [#allocation8], 128, 128, 8
    $region25: #{_lambda_.1} parent=1 // pred_fallthru
      _
    // Predicated region
    $region26: #{_lambda_.1} parent=1 // pred_check
      _
    $region27: #{_lambda_.1} parent=1 // pred_check_branch
      %70 = sbr.rel (0) target = $region29
    $region28: #{_lambda_.1} parent=1 // pred_region
      %s72 = ssub.s32 1024, 1024
      %73 = vsyncadd [#allocation8], %s72
      %s74 = sshll.u32 [#allocation9], 4
      %s75 = int_to_ptr.vmem [resolvable:$true] %s74
      %80 = dma.hbm_to_vmem [thread:$0]  %s6, 1024, %s75, [#allocation8], 128, 128, 8
    $region29: #{_lambda_.1} parent=1 // pred_fallthru
      _
    // Predicated region
    $region30: #{_lambda_.1} parent=1 // pred_check
      _
    $region31: #{_lambda_.1} parent=1 // pred_check_branch
      %82 = sbr.rel (0) target = $region33
    $region32: #{_lambda_.1} parent=1 // pred_region
      _
    $region33: #{_lambda_.1} parent=1 // pred_fallthru
      _
    // Predicated region
    $region34: #{_lambda_.1} parent=1 // pred_check
      _
    $region35: #{_lambda_.1} parent=1 // pred_check_branch
      %84 = sbr.rel (0) target = $region37
    $region36: #{_lambda_.1} parent=1 // pred_region
      _
    $region37: #{_lambda_.1} parent=1 // pred_fallthru
      _
    // Predicated region
    $region38: #{_lambda_.1} parent=1 // pred_check
      _
    $region39: #{_lambda_.1} parent=1 // pred_check_branch
      %86 = sbr.rel (0) target = $region41
    $region40: #{_lambda_.1} parent=1 // pred_region
      %87 = dma.done [#allocation3], 1024
    $region41: #{_lambda_.1} parent=1 // pred_fallthru
      _
    // Predicated region
    $region42: #{_lambda_.1} parent=1 // pred_check
      _
    $region43: #{_lambda_.1} parent=1 // pred_check_branch
      %89 = sbr.rel (0) target = $region45
    $region44: #{_lambda_.1} parent=1 // pred_region
      %90 = dma.done [#allocation5], 1024
    $region45: #{_lambda_.1} parent=1 // pred_fallthru
      _
    // Predicated region
    $region46: #{_lambda_.1} parent=1 // pred_check
      _
    $region47: #{_lambda_.1} parent=1 // pred_check_branch
      %92 = sbr.rel (0) target = $region49
    $region48: #{_lambda_.1} parent=1 // pred_region
      %93 = dma.done [#allocation5], 1024
    $region49: #{_lambda_.1} parent=1 // pred_fallthru
      _
    // Predicated region
    $region50: #{_lambda_.1} parent=1 // pred_check
      _
    $region51: #{_lambda_.1} parent=1 // pred_check_branch
      %95 = sbr.rel (0) target = $region53
    $region52: #{_lambda_.1} parent=1 // pred_region
      %96 = dma.done [#allocation8], 1024
    $region53: #{_lambda_.1} parent=1 // pred_fallthru
      _
    // Predicated region
    $region54: #{_lambda_.1} parent=1 // pred_check
      _
    $region55: #{_lambda_.1} parent=1 // pred_check_branch
      %98 = sbr.rel (0) target = $region57
    $region56: #{_lambda_.1} parent=1 // pred_region
      %99 = dma.done [#allocation8], 1024
    $region57: #{_lambda_.1} parent=1 // pred_fallthru
      _
    %v100 = vld [vmem:[#allocation2] sm:$0xff]
    %v101 = vld [vmem:[#allocation2 + $0x8] sm:$0xff]
    %v102 = vld [vmem:[#allocation2 + $0x10] sm:$0xff]
    %v103 = vld [vmem:[#allocation2 + $0x18] sm:$0xff]
    %v104 = vld [vmem:[#allocation2 + $0x20] sm:$0xff]
    %v105 = vld [vmem:[#allocation2 + $0x28] sm:$0xff]
    %v106 = vld [vmem:[#allocation2 + $0x30] sm:$0xff]
    %v107 = vld [vmem:[#allocation2 + $0x38] sm:$0xff]
    %v108 = vld [vmem:[%s0] sm:$0xff]
    %v109 = vld [vmem:[#allocation4] sm:$0xff]
    %v110 = vld [vmem:[#allocation4 + $0x8] sm:$0xff]
    %v111 = vld [vmem:[#allocation4 + $0x10] sm:$0xff]
    %v112 = vld [vmem:[#allocation4 + $0x18] sm:$0xff]
    %v113 = vld [vmem:[#allocation4 + $0x20] sm:$0xff]
    %v114 = vld [vmem:[#allocation4 + $0x28] sm:$0xff]
    %v115 = vld [vmem:[#allocation4 + $0x30] sm:$0xff]
    %v116 = vld [vmem:[#allocation4 + $0x38] sm:$0xff]
    %v117 = vld [vmem:[%s1] sm:$0xf]
    %vm118 = vcmask 31744
    %v120 = vsel %vm118, %v109, 0
    %v123 = vsel %vm118, %v110, 0
    %v126 = vsel %vm118, %v111, 0
    %v129 = vsel %vm118, %v112, 0
    %v132 = vsel %vm118, %v113, 0
    %v135 = vsel %vm118, %v114, 0
    %v138 = vsel %vm118, %v115, 0
    %v141 = vsel %vm118, %v116, 0
    %vm143 = vcmask 1043456
    %v145 = vsel %vm143, %v117, 0
    %147 = vmatprep.subr.mxu0 0.0
    %148 = vmatpush1.msra.mxu0 0.0
    %149 = vmatprep.subr.mxu0 0.0
    %150 = vmatpush1.msra.mxu0 0.0
    %151 = vmatprep.subr.mxu0 0.0
    %152 = vmatpush1.msra.mxu0 0.0
    %153 = vmatprep.subr.mxu0 0.0
    %154 = vmatpush1.msra.mxu0 0.0
    %155 = vmatprep.subr.mxu0 0.0
    %156 = vmatpush1.msra.mxu0 0.0
    %157 = vmatprep.subr.mxu0 0.0
    %158 = vmatpush1.msra.mxu0 0.0
    %159 = vmatprep.subr.mxu0 0.0
    %160 = vmatpush1.msra.mxu0 0.0
    %161 = vmatprep.subr.mxu0 0.0
    %162 = vmatpush1.msra.mxu0 0.0
    %163 = vmatprep.subr.mxu0 0.0
    %164 = vmatpush1.msra.mxu0 0.0
    %165 = vmatprep.subr.mxu0 0.0
    %166 = vmatpush1.msra.mxu0 0.0
    %167 = vmatprep.subr.mxu0 0.0
    %168 = vmatpush1.msra.mxu0 0.0
    %169 = vmatprep.subr.mxu0 0.0
    %170 = vmatpush1.msra.mxu0 0.0
    %171 = vmatprep.subr.mxu0 0.0
    %172 = vmatpush1.msra.mxu0 0.0
    %173 = vmatprep.subr.mxu0 0.0
    %174 = vmatpush1.msra.mxu0 0.0
    %175 = vmatprep.subr.mxu0 0.0
    %176 = vmatpush1.msra.mxu0 0.0
    %177 = vmatprep.subr.mxu0 0.0
    %178 = vmatpush1.msra.mxu0 %v145
    %179 = vmatprep.subr.mxu0 0.0
    %180 = vmatpush2.msra.mxu0 0.0
    %181 = vmatprep.subr.mxu0 0.0
    %182 = vmatpush2.msra.mxu0 0.0
    %183 = vmatprep.subr.mxu0 0.0
    %184 = vmatpush2.msra.mxu0 0.0
    %185 = vmatprep.subr.mxu0 0.0
    %186 = vmatpush2.msra.mxu0 0.0
    %187 = vmatprep.subr.mxu0 0.0
    %188 = vmatpush2.msra.mxu0 0.0
    %189 = vmatprep.subr.mxu0 0.0
    %190 = vmatpush2.msra.mxu0 0.0
    %191 = vmatprep.subr.mxu0 0.0
    %192 = vmatpush2.msra.mxu0 0.0
    %193 = vmatprep.subr.mxu0 0.0
    %194 = vmatpush2.msra.mxu0 0.0
    %195 = vmatprep.subr.mxu0 0.0
    %196 = vmatpush2.msra.mxu0 0.0
    %197 = vmatprep.subr.mxu0 0.0
    %198 = vmatpush2.msra.mxu0 0.0
    %199 = vmatprep.subr.mxu0 0.0
    %200 = vmatpush2.msra.mxu0 0.0
    %201 = vmatprep.subr.mxu0 0.0
    %202 = vmatpush2.msra.mxu0 0.0
    %203 = vmatprep.subr.mxu0 0.0
    %204 = vmatpush2.msra.mxu0 0.0
    %205 = vmatprep.subr.mxu0 0.0
    %206 = vmatpush2.msra.mxu0 0.0
    %207 = vmatprep.subr.mxu0 0.0
    %208 = vmatpush2.msra.mxu0 0.0
    %209 = vmatprep.subr.mxu0 0.0
    %210 = vmatpush2.msra.mxu0 0.0
    %211 = vmatprep.mubr.f32.mxu0 0.0
    %212 = vmatmul.mubr.f32.gmra.mxu0 %v120
    %v213 = vpop.f32.mrf.mxu0
    %v214 = vadd.f32 0.0, %v213
    %v215 = vpop.f32.mrf.mxu0
    %216 = vmatprep.mubr.f32.mxu0 0.0
    %217 = vmatmul.mubr.f32.gmra.mxu0 %v123
    %v218 = vpop.f32.mrf.mxu0
    %v219 = vadd.f32 0.0, %v218
    %v220 = vpop.f32.mrf.mxu0
    %221 = vmatprep.mubr.f32.mxu0 0.0
    %222 = vmatmul.mubr.f32.gmra.mxu0 %v126
    %v223 = vpop.f32.mrf.mxu0
    %v224 = vadd.f32 0.0, %v223
    %v225 = vpop.f32.mrf.mxu0
    %226 = vmatprep.mubr.f32.mxu0 0.0
    %227 = vmatmul.mubr.f32.gmra.mxu0 %v129
    %v228 = vpop.f32.mrf.mxu0
    %v229 = vadd.f32 0.0, %v228
    %v230 = vpop.f32.mrf.mxu0
    %231 = vmatprep.mubr.f32.mxu0 0.0
    %232 = vmatmul.mubr.f32.gmra.mxu0 %v132
    %v233 = vpop.f32.mrf.mxu0
    %v234 = vadd.f32 0.0, %v233
    %v235 = vpop.f32.mrf.mxu0
    %236 = vmatprep.mubr.f32.mxu0 0.0
    %237 = vmatmul.mubr.f32.gmra.mxu0 %v135
    %v238 = vpop.f32.mrf.mxu0
    %v239 = vadd.f32 0.0, %v238
    %v240 = vpop.f32.mrf.mxu0
    %241 = vmatprep.mubr.f32.mxu0 0.0
    %242 = vmatmul.mubr.f32.gmra.mxu0 %v138
    %v243 = vpop.f32.mrf.mxu0
    %v244 = vadd.f32 0.0, %v243
    %v245 = vpop.f32.mrf.mxu0
    %246 = vmatprep.mubr.f32.mxu0 0.0
    %247 = vmatmul.mubr.f32.gmra.mxu0 %v141
    %v248 = vpop.f32.mrf.mxu0
    %v249 = vadd.f32 0.0, %v248
    %v250 = vpop.f32.mrf.mxu0
    %251 = vdwg.mxu0
    %vm252 = vcmask 64512
    %v254 = vsel %vm252, %v100, 0
    %v257 = vsel %vm252, %v101, 0
    %v260 = vsel %vm252, %v102, 0
    %v263 = vsel %vm252, %v103, 0
    %v266 = vsel %vm252, %v104, 0
    %v269 = vsel %vm252, %v105, 0
    %v272 = vsel %vm252, %v106, 0
    %v275 = vsel %vm252, %v107, 0
    %277 = vmatprep.subr.mxu0 0.0
    %278 = vmatpush1.msra.mxu0 0.0
    %279 = vmatprep.subr.mxu0 0.0
    %280 = vmatpush1.msra.mxu0 0.0
    %281 = vmatprep.subr.mxu0 0.0
    %282 = vmatpush1.msra.mxu0 0.0
    %283 = vmatprep.subr.mxu0 0.0
    %284 = vmatpush1.msra.mxu0 0.0
    %285 = vmatprep.subr.mxu0 0.0
    %286 = vmatpush1.msra.mxu0 0.0
    %287 = vmatprep.subr.mxu0 0.0
    %288 = vmatpush1.msra.mxu0 0.0
    %289 = vmatprep.subr.mxu0 0.0
    %290 = vmatpush1.msra.mxu0 0.0
    %291 = vmatprep.subr.mxu0 0.0
    %292 = vmatpush1.msra.mxu0 0.0
    %293 = vmatprep.subr.mxu0 0.0
    %294 = vmatpush1.msra.mxu0 0.0
    %295 = vmatprep.subr.mxu0 0.0
    %296 = vmatpush1.msra.mxu0 0.0
    %297 = vmatprep.subr.mxu0 0.0
    %298 = vmatpush1.msra.mxu0 0.0
    %299 = vmatprep.subr.mxu0 0.0
    %300 = vmatpush1.msra.mxu0 0.0
    %301 = vmatprep.subr.mxu0 0.0
    %302 = vmatpush1.msra.mxu0 0.0
    %303 = vmatprep.subr.mxu0 0.0
    %304 = vmatpush1.msra.mxu0 0.0
    %305 = vmatprep.subr.mxu0 0.0
    %306 = vmatpush1.msra.mxu0 0.0
    %307 = vmatprep.subr.mxu0 0.0
    %308 = vmatpush1.msra.mxu0 %v108
    %309 = vmatprep.subr.mxu0 0.0
    %310 = vmatpush2.msra.mxu0 0.0
    %311 = vmatprep.subr.mxu0 0.0
    %312 = vmatpush2.msra.mxu0 0.0
    %313 = vmatprep.subr.mxu0 0.0
    %314 = vmatpush2.msra.mxu0 0.0
    %315 = vmatprep.subr.mxu0 0.0
    %316 = vmatpush2.msra.mxu0 0.0
    %317 = vmatprep.subr.mxu0 0.0
    %318 = vmatpush2.msra.mxu0 0.0
    %319 = vmatprep.subr.mxu0 0.0
    %320 = vmatpush2.msra.mxu0 0.0
    %321 = vmatprep.subr.mxu0 0.0
    %322 = vmatpush2.msra.mxu0 0.0
    %323 = vmatprep.subr.mxu0 0.0
    %324 = vmatpush2.msra.mxu0 0.0
    %325 = vmatprep.subr.mxu0 0.0
    %326 = vmatpush2.msra.mxu0 0.0
    %327 = vmatprep.subr.mxu0 0.0
    %328 = vmatpush2.msra.mxu0 0.0
    %329 = vmatprep.subr.mxu0 0.0
    %330 = vmatpush2.msra.mxu0 0.0
    %331 = vmatprep.subr.mxu0 0.0
    %332 = vmatpush2.msra.mxu0 0.0
    %333 = vmatprep.subr.mxu0 0.0
    %334 = vmatpush2.msra.mxu0 0.0
    %335 = vmatprep.subr.mxu0 0.0
    %336 = vmatpush2.msra.mxu0 0.0
    %337 = vmatprep.subr.mxu0 0.0
    %338 = vmatpush2.msra.mxu0 0.0
    %339 = vmatprep.subr.mxu0 0.0
    %340 = vmatpush2.msra.mxu0 0.0
    %341 = vmatprep.mubr.f32.mxu0 0.0
    %342 = vmatmul.mubr.f32.gmra.mxu0 %v254
    %v343 = vpop.f32.mrf.mxu0
    %v344 = vadd.f32 %v214, %v343
    %v345 = vpop.f32.mrf.mxu0
    %346 = vmatprep.mubr.f32.mxu0 0.0
    %347 = vmatmul.mubr.f32.gmra.mxu0 %v257
    %v348 = vpop.f32.mrf.mxu0
    %v349 = vadd.f32 %v219, %v348
    %v350 = vpop.f32.mrf.mxu0
    %351 = vmatprep.mubr.f32.mxu0 0.0
    %352 = vmatmul.mubr.f32.gmra.mxu0 %v260
    %v353 = vpop.f32.mrf.mxu0
    %v354 = vadd.f32 %v224, %v353
    %v355 = vpop.f32.mrf.mxu0
    %356 = vmatprep.mubr.f32.mxu0 0.0
    %357 = vmatmul.mubr.f32.gmra.mxu0 %v263
    %v358 = vpop.f32.mrf.mxu0
    %v359 = vadd.f32 %v229, %v358
    %v360 = vpop.f32.mrf.mxu0
    %361 = vmatprep.mubr.f32.mxu0 0.0
    %362 = vmatmul.mubr.f32.gmra.mxu0 %v266
    %v363 = vpop.f32.mrf.mxu0
    %v364 = vadd.f32 %v234, %v363
    %v365 = vpop.f32.mrf.mxu0
    %366 = vmatprep.mubr.f32.mxu0 0.0
    %367 = vmatmul.mubr.f32.gmra.mxu0 %v269
    %v368 = vpop.f32.mrf.mxu0
    %v369 = vadd.f32 %v239, %v368
    %v370 = vpop.f32.mrf.mxu0
    %371 = vmatprep.mubr.f32.mxu0 0.0
    %372 = vmatmul.mubr.f32.gmra.mxu0 %v272
    %v373 = vpop.f32.mrf.mxu0
    %v374 = vadd.f32 %v244, %v373
    %v375 = vpop.f32.mrf.mxu0
    %376 = vmatprep.mubr.f32.mxu0 0.0
    %377 = vmatmul.mubr.f32.gmra.mxu0 %v275
    %v378 = vpop.f32.mrf.mxu0
    %v379 = vadd.f32 %v249, %v378
    %v380 = vpop.f32.mrf.mxu0
    %381 = vdwg.mxu0
    %v382 = vld [vmem:[#allocation6] sm:$0xff]
    %v383 = vld [vmem:[#allocation6 + $0x8] sm:$0xff]
    %v384 = vld [vmem:[#allocation6 + $0x10] sm:$0xff]
    %v385 = vld [vmem:[#allocation6 + $0x18] sm:$0xff]
    %v386 = vld [vmem:[#allocation6 + $0x20] sm:$0xff]
    %v387 = vld [vmem:[#allocation6 + $0x28] sm:$0xff]
    %v388 = vld [vmem:[#allocation6 + $0x30] sm:$0xff]
    %v389 = vld [vmem:[#allocation6 + $0x38] sm:$0xff]
    %391 = vset.pattern.permute.xlu0 0
    %392 = vperm.xlu0 %391, %v382
    %v393 = vpop.permute.xlu0 %392
    %396 = vset.pattern.permute.xlu0 0
    %397 = vperm.xlu0 %396, %v383
    %v398 = vpop.permute.xlu0 %397
    %401 = vset.pattern.permute.xlu0 0
    %402 = vperm.xlu0 %401, %v384
    %v403 = vpop.permute.xlu0 %402
    %406 = vset.pattern.permute.xlu0 0
    %407 = vperm.xlu0 %406, %v385
    %v408 = vpop.permute.xlu0 %407
    %411 = vset.pattern.permute.xlu0 0
    %412 = vperm.xlu0 %411, %v386
    %v413 = vpop.permute.xlu0 %412
    %416 = vset.pattern.permute.xlu0 0
    %417 = vperm.xlu0 %416, %v387
    %v418 = vpop.permute.xlu0 %417
    %421 = vset.pattern.permute.xlu0 0
    %422 = vperm.xlu0 %421, %v388
    %v423 = vpop.permute.xlu0 %422
    %426 = vset.pattern.permute.xlu0 0
    %427 = vperm.xlu0 %426, %v389
    %v428 = vpop.permute.xlu0 %427
    %v430 = vadd.f32 %v344, %v393
    %v431 = vadd.f32 %v349, %v398
    %v432 = vadd.f32 %v354, %v403
    %v433 = vadd.f32 %v359, %v408
    %v434 = vadd.f32 %v364, %v413
    %v435 = vadd.f32 %v369, %v418
    %v436 = vadd.f32 %v374, %v423
    %v437 = vadd.f32 %v379, %v428
    %v438 = vmax.f32 %v430, 0.0
    %v439 = vmax.f32 %v431, 0.0
    %v440 = vmax.f32 %v432, 0.0
    %v441 = vmax.f32 %v433, 0.0
    %v442 = vmax.f32 %v434, 0.0
    %v443 = vmax.f32 %v435, 0.0
    %v444 = vmax.f32 %v436, 0.0
    %v445 = vmax.f32 %v437, 0.0
    %v446 = vld [vmem:[#allocation7] sm:$0xff]
    %v447 = vld [vmem:[#allocation7 + $0x8] sm:$0xff]
    %v448 = vld [vmem:[#allocation7 + $0x10] sm:$0xff]
    %v449 = vld [vmem:[#allocation7 + $0x18] sm:$0xff]
    %v450 = vld [vmem:[#allocation7 + $0x20] sm:$0xff]
    %v451 = vld [vmem:[#allocation7 + $0x28] sm:$0xff]
    %v452 = vld [vmem:[#allocation7 + $0x30] sm:$0xff]
    %v453 = vld [vmem:[#allocation7 + $0x38] sm:$0xff]
    %v454 = vld [vmem:[#allocation9] sm:$0xff]
    %v455 = vld [vmem:[#allocation9 + $0x8] sm:$0xff]
    %v456 = vld [vmem:[#allocation9 + $0x10] sm:$0xff]
    %v457 = vld [vmem:[#allocation9 + $0x18] sm:$0xff]
    %v458 = vld [vmem:[#allocation9 + $0x20] sm:$0xff]
    %v459 = vld [vmem:[#allocation9 + $0x28] sm:$0xff]
    %v460 = vld [vmem:[#allocation9 + $0x30] sm:$0xff]
    %v461 = vld [vmem:[#allocation9 + $0x38] sm:$0xff]
    %463 = vset.pattern.permute.xlu0 0
    %464 = vperm.xlu0 %463, %v454
    %v465 = vpop.permute.xlu0 %464
    %468 = vset.pattern.permute.xlu0 0
    %469 = vperm.xlu0 %468, %v455
    %v470 = vpop.permute.xlu0 %469
    %473 = vset.pattern.permute.xlu0 0
    %474 = vperm.xlu0 %473, %v456
    %v475 = vpop.permute.xlu0 %474
    %478 = vset.pattern.permute.xlu0 0
    %479 = vperm.xlu0 %478, %v457
    %v480 = vpop.permute.xlu0 %479
    %483 = vset.pattern.permute.xlu0 0
    %484 = vperm.xlu0 %483, %v458
    %v485 = vpop.permute.xlu0 %484
    %488 = vset.pattern.permute.xlu0 0
    %489 = vperm.xlu0 %488, %v459
    %v490 = vpop.permute.xlu0 %489
    %493 = vset.pattern.permute.xlu0 0
    %494 = vperm.xlu0 %493, %v460
    %v495 = vpop.permute.xlu0 %494
    %498 = vset.pattern.permute.xlu0 0
    %499 = vperm.xlu0 %498, %v461
    %v500 = vpop.permute.xlu0 %499
    %vm502 = vcmask 523264
    %v504 = vsel %vm502, %v446, 0
    %v507 = vsel %vm502, %v447, 0
    %v510 = vsel %vm502, %v448, 0
    %v513 = vsel %vm502, %v449, 0
    %v516 = vsel %vm502, %v450, 0
    %v519 = vsel %vm502, %v451, 0
    %v522 = vsel %vm502, %v452, 0
    %v525 = vsel %vm502, %v453, 0
    %527 = vmatprep.subr.mxu0 0.0
    %528 = vmatpush1.msra.mxu0 0.0
    %529 = vmatprep.subr.mxu0 0.0
    %530 = vmatpush1.msra.mxu0 0.0
    %531 = vmatprep.subr.mxu0 0.0
    %532 = vmatpush1.msra.mxu0 0.0
    %533 = vmatprep.subr.mxu0 0.0
    %534 = vmatpush1.msra.mxu0 0.0
    %535 = vmatprep.subr.mxu0 0.0
    %536 = vmatpush1.msra.mxu0 0.0
    %537 = vmatprep.subr.mxu0 0.0
    %538 = vmatpush1.msra.mxu0 0.0
    %539 = vmatprep.subr.mxu0 0.0
    %540 = vmatpush1.msra.mxu0 0.0
    %541 = vmatprep.subr.mxu0 0.0
    %542 = vmatpush1.msra.mxu0 0.0
    %543 = vmatprep.subr.mxu0 0.0
    %544 = vmatpush1.msra.mxu0 %v445
    %545 = vmatprep.subr.mxu0 0.0
    %546 = vmatpush1.msra.mxu0 %v444
    %547 = vmatprep.subr.mxu0 0.0
    %548 = vmatpush1.msra.mxu0 %v443
    %549 = vmatprep.subr.mxu0 0.0
    %550 = vmatpush1.msra.mxu0 %v442
    %551 = vmatprep.subr.mxu0 0.0
    %552 = vmatpush1.msra.mxu0 %v441
    %553 = vmatprep.subr.mxu0 0.0
    %554 = vmatpush1.msra.mxu0 %v440
    %555 = vmatprep.subr.mxu0 0.0
    %556 = vmatpush1.msra.mxu0 %v439
    %557 = vmatprep.subr.mxu0 0.0
    %558 = vmatpush1.msra.mxu0 %v438
    %559 = vmatprep.subr.mxu0 0.0
    %560 = vmatpush2.msra.mxu0 0.0
    %561 = vmatprep.subr.mxu0 0.0
    %562 = vmatpush2.msra.mxu0 0.0
    %563 = vmatprep.subr.mxu0 0.0
    %564 = vmatpush2.msra.mxu0 0.0
    %565 = vmatprep.subr.mxu0 0.0
    %566 = vmatpush2.msra.mxu0 0.0
    %567 = vmatprep.subr.mxu0 0.0
    %568 = vmatpush2.msra.mxu0 0.0
    %569 = vmatprep.subr.mxu0 0.0
    %570 = vmatpush2.msra.mxu0 0.0
    %571 = vmatprep.subr.mxu0 0.0
    %572 = vmatpush2.msra.mxu0 0.0
    %573 = vmatprep.subr.mxu0 0.0
    %574 = vmatpush2.msra.mxu0 0.0
    %575 = vmatprep.subr.mxu0 0.0
    %576 = vmatpush2.msra.mxu0 0.0
    %577 = vmatprep.subr.mxu0 0.0
    %578 = vmatpush2.msra.mxu0 0.0
    %579 = vmatprep.subr.mxu0 0.0
    %580 = vmatpush2.msra.mxu0 0.0
    %581 = vmatprep.subr.mxu0 0.0
    %582 = vmatpush2.msra.mxu0 0.0
    %583 = vmatprep.subr.mxu0 0.0
    %584 = vmatpush2.msra.mxu0 0.0
    %585 = vmatprep.subr.mxu0 0.0
    %586 = vmatpush2.msra.mxu0 0.0
    %587 = vmatprep.subr.mxu0 0.0
    %588 = vmatpush2.msra.mxu0 0.0
    %589 = vmatprep.subr.mxu0 0.0
    %590 = vmatpush2.msra.mxu0 0.0
    %591 = vmatprep.mubr.f32.mxu0 0.0
    %592 = vmatmul.mubr.f32.gmra.mxu0 %v504
    %v593 = vpop.f32.mrf.mxu0
    %v594 = vadd.f32 %v465, %v593
    %v595 = vpop.f32.mrf.mxu0
    %596 = vmatprep.mubr.f32.mxu0 0.0
    %597 = vmatmul.mubr.f32.gmra.mxu0 %v507
    %v598 = vpop.f32.mrf.mxu0
    %v599 = vadd.f32 %v470, %v598
    %v600 = vpop.f32.mrf.mxu0
    %601 = vmatprep.mubr.f32.mxu0 0.0
    %602 = vmatmul.mubr.f32.gmra.mxu0 %v510
    %v603 = vpop.f32.mrf.mxu0
    %v604 = vadd.f32 %v475, %v603
    %v605 = vpop.f32.mrf.mxu0
    %606 = vmatprep.mubr.f32.mxu0 0.0
    %607 = vmatmul.mubr.f32.gmra.mxu0 %v513
    %v608 = vpop.f32.mrf.mxu0
    %v609 = vadd.f32 %v480, %v608
    %v610 = vpop.f32.mrf.mxu0
    %611 = vmatprep.mubr.f32.mxu0 0.0
    %612 = vmatmul.mubr.f32.gmra.mxu0 %v516
    %v613 = vpop.f32.mrf.mxu0
    %v614 = vadd.f32 %v485, %v613
    %v615 = vpop.f32.mrf.mxu0
    %616 = vmatprep.mubr.f32.mxu0 0.0
    %617 = vmatmul.mubr.f32.gmra.mxu0 %v519
    %v618 = vpop.f32.mrf.mxu0
    %v619 = vadd.f32 %v490, %v618
    %v620 = vpop.f32.mrf.mxu0
    %621 = vmatprep.mubr.f32.mxu0 0.0
    %622 = vmatmul.mubr.f32.gmra.mxu0 %v522
    %v623 = vpop.f32.mrf.mxu0
    %v624 = vadd.f32 %v495, %v623
    %v625 = vpop.f32.mrf.mxu0
    %626 = vmatprep.mubr.f32.mxu0 0.0
    %627 = vmatmul.mubr.f32.gmra.mxu0 %v525
    %v628 = vpop.f32.mrf.mxu0
    %v629 = vadd.f32 %v500, %v628
    %v630 = vpop.f32.mrf.mxu0
    %631 = vdwg.mxu0
    %v632 = vmax.f32 %v594, 0.0
    %v633 = vmax.f32 %v599, 0.0
    %v634 = vmax.f32 %v604, 0.0
    %v635 = vmax.f32 %v609, 0.0
    %v636 = vmax.f32 %v614, 0.0
    %v637 = vmax.f32 %v619, 0.0
    %v638 = vmax.f32 %v624, 0.0
    %v639 = vmax.f32 %v629, 0.0
    %v640 = vld [vmem:[%s7] sm:$0x3]
    %v641 = vld [vmem:[%s8] sm:$0x3]
    %643 = vset.pattern.permute.xlu0 0
    %644 = vperm.xlu0 %643, %v641
    %v645 = vpop.permute.xlu0 %644
    %v648 = vsel %vm502, %v640, 0
    %650 = vmatprep.subr.mxu0 0.0
    %651 = vmatpush1.msra.mxu0 0.0
    %652 = vmatprep.subr.mxu0 0.0
    %653 = vmatpush1.msra.mxu0 0.0
    %654 = vmatprep.subr.mxu0 0.0
    %655 = vmatpush1.msra.mxu0 0.0
    %656 = vmatprep.subr.mxu0 0.0
    %657 = vmatpush1.msra.mxu0 0.0
    %658 = vmatprep.subr.mxu0 0.0
    %659 = vmatpush1.msra.mxu0 0.0
    %660 = vmatprep.subr.mxu0 0.0
    %661 = vmatpush1.msra.mxu0 0.0
    %662 = vmatprep.subr.mxu0 0.0
    %663 = vmatpush1.msra.mxu0 0.0
    %664 = vmatprep.subr.mxu0 0.0
    %665 = vmatpush1.msra.mxu0 0.0
    %666 = vmatprep.subr.mxu0 0.0
    %667 = vmatpush1.msra.mxu0 %v639
    %668 = vmatprep.subr.mxu0 0.0
    %669 = vmatpush1.msra.mxu0 %v638
    %670 = vmatprep.subr.mxu0 0.0
    %671 = vmatpush1.msra.mxu0 %v637
    %672 = vmatprep.subr.mxu0 0.0
    %673 = vmatpush1.msra.mxu0 %v636
    %674 = vmatprep.subr.mxu0 0.0
    %675 = vmatpush1.msra.mxu0 %v635
    %676 = vmatprep.subr.mxu0 0.0
    %677 = vmatpush1.msra.mxu0 %v634
    %678 = vmatprep.subr.mxu0 0.0
    %679 = vmatpush1.msra.mxu0 %v633
    %680 = vmatprep.subr.mxu0 0.0
    %681 = vmatpush1.msra.mxu0 %v632
    %682 = vmatprep.subr.mxu0 0.0
    %683 = vmatpush2.msra.mxu0 0.0
    %684 = vmatprep.subr.mxu0 0.0
    %685 = vmatpush2.msra.mxu0 0.0
    %686 = vmatprep.subr.mxu0 0.0
    %687 = vmatpush2.msra.mxu0 0.0
    %688 = vmatprep.subr.mxu0 0.0
    %689 = vmatpush2.msra.mxu0 0.0
    %690 = vmatprep.subr.mxu0 0.0
    %691 = vmatpush2.msra.mxu0 0.0
    %692 = vmatprep.subr.mxu0 0.0
    %693 = vmatpush2.msra.mxu0 0.0
    %694 = vmatprep.subr.mxu0 0.0
    %695 = vmatpush2.msra.mxu0 0.0
    %696 = vmatprep.subr.mxu0 0.0
    %697 = vmatpush2.msra.mxu0 0.0
    %698 = vmatprep.subr.mxu0 0.0
    %699 = vmatpush2.msra.mxu0 0.0
    %700 = vmatprep.subr.mxu0 0.0
    %701 = vmatpush2.msra.mxu0 0.0
    %702 = vmatprep.subr.mxu0 0.0
    %703 = vmatpush2.msra.mxu0 0.0
    %704 = vmatprep.subr.mxu0 0.0
    %705 = vmatpush2.msra.mxu0 0.0
    %706 = vmatprep.subr.mxu0 0.0
    %707 = vmatpush2.msra.mxu0 0.0
    %708 = vmatprep.subr.mxu0 0.0
    %709 = vmatpush2.msra.mxu0 0.0
    %710 = vmatprep.subr.mxu0 0.0
    %711 = vmatpush2.msra.mxu0 0.0
    %712 = vmatprep.subr.mxu0 0.0
    %713 = vmatpush2.msra.mxu0 0.0
    %714 = vmatprep.mubr.f32.mxu0 0.0
    %715 = vmatmul.mubr.f32.gmra.mxu0 %v648
    %v716 = vpop.f32.mrf.mxu0
    %v717 = vadd.f32 %v645, %v716
    %v718 = vpop.f32.mrf.mxu0
    %719 = vdwg.mxu0
    %720 = vst [vmem:[%s9] sm:$0x3] %v717
    // Predicated region
    $region58: #{_lambda_.1} parent=1 // pred_check
      _
    $region59: #{_lambda_.1} parent=1 // pred_check_branch
      %722 = sbr.rel (0) target = $region61
    $region60: #{_lambda_.1} parent=1 // pred_region
      _
    $region61: #{_lambda_.1} parent=1 // pred_fallthru
      _
    // Predicated region
    $region62: #{_lambda_.1} parent=1 // pred_check
      _
    $region63: #{_lambda_.1} parent=1 // pred_check_branch
      %724 = sbr.rel (0) target = $region65
    $region64: #{_lambda_.1} parent=1 // pred_region
      _
    $region65: #{_lambda_.1} parent=1 // pred_fallthru
      _
    %725 = vsyncpa [#allocation3], 1
    %726 = vsyncpa [#allocation5], 1
    %727 = vsyncpa [#allocation8], 1

</llo_original>
